<compile_context>
chip_gen: v7x
topology: tpu7x:2x2x1
jax: 0.10.0
libtpu: 0.0.40
codegen_flags: <defaults>
</compile_context>

<pallas_src>
import functools

import jax
import jax.numpy as jnp
import numpy as np
from jax import lax
from jax.experimental import pallas as pl
from jax.experimental.pallas import tpu as pltpu


def _st_kernel(idx_ref, wts_ref, src_ref, out_ref, *, h_in, w_in, c_pad):
    t = idx_ref.shape[-1]

    ix0 = idx_ref[0:1, :]          # (1, T) int32
    ix1 = idx_ref[1:2, :]
    iy0 = idx_ref[2:3, :]
    iy1 = idx_ref[3:4, :]
    wx0 = wts_ref[0:1, :]          # (1, T) f32
    wx1 = wts_ref[1:2, :]
    wy0 = wts_ref[2:3, :]
    wy1 = wts_ref[3:4, :]

    # Factored interpolation slabs (no (P_in, P_out) materialization).
    col_x = lax.broadcasted_iota(jnp.int32, (w_in, t), 0)
    ax = jnp.where(col_x == ix0, wx0, 0.0) + jnp.where(col_x == ix1, wx1, 0.0)   # (W_in, T)

    col_y = lax.broadcasted_iota(jnp.int32, (h_in, t), 0)
    ay = jnp.where(col_y == iy0, wy0, 0.0) + jnp.where(col_y == iy1, wy1, 0.0)   # (H_in, T)

    # x-contraction on the MXU: (C_pad*H_in, W_in) @ (W_in, T)
    tmp = jnp.dot(src_ref[...], ax, preferred_element_type=jnp.float32)          # (C_pad*H_in, T)

    # y-contraction on the VPU: out[c, p] = sum_y Ay[y, p] * tmp[c*H_in + y, p]
    tmp = tmp.reshape(c_pad, h_in, t)
    out_ref[...] = jnp.sum(tmp * ay[None, :, :], axis=1).astype(out_ref.dtype)


def make_base_grid(size):
    # matches: x, y = [1/s * arange(0, s) for s in size]; X, Y = meshgrid(x, y, 'xy')
    s0, s1 = size
    x = (1.0 / s0) * jnp.arange(s0, dtype=jnp.float32)
    y = (1.0 / s1) * jnp.arange(s1, dtype=jnp.float32)
    X, Y = jnp.meshgrid(x, y, indexing="xy")   # each (s1, s0)
    return X, Y


def spatial_transformer(src, flowX, flowY, size, return_phi=False, tile=512):
    """src: (1, C, H_in, W_in); flowX/flowY: same shape as the base grid (s1, s0)."""
    n, c, h_in, w_in = src.shape
    assert n == 1, "grid batch is 1, so src batch must be 1 (as in the torch module)"
    X, Y = make_base_grid(size)
    h_out, w_out = X.shape
    assert flowX.shape == (h_out, w_out) and flowY.shape == (h_out, w_out)

    # ---- hoisted (global, tiny) coordinate math -------------------------------
    new_x = X + flowX.astype(jnp.float32)
    new_y = Y + flowY.astype(jnp.float32)
    # global min/max normalization to [-1, 1] (exactly as the torch module does)
    new_x = 2.0 * (new_x - new_x.min()) / (new_x.max() - new_x.min()) - 1.0
    new_y = 2.0 * (new_y - new_y.min()) / (new_y.max() - new_y.min()) - 1.0
    # TODO(synk): torch's range asserts are true by construction; divide-by-zero on a
    # degenerate (constant) coordinate field mirrors the torch behavior and is not guarded.

    # grid_sample unnormalization, align_corners=True: pixel = (coord + 1)/2 * (size - 1)
    ix = (new_x + 1.0) * 0.5 * jnp.float32(w_in - 1)
    iy = (new_y + 1.0) * 0.5 * jnp.float32(h_in - 1)
    ix0f = jnp.floor(ix)
    iy0f = jnp.floor(iy)
    wx1 = ix - ix0f
    wx0 = 1.0 - wx1
    wy1 = iy - iy0f
    wy0 = 1.0 - wy1
    ix0 = jnp.clip(ix0f.astype(jnp.int32), 0, w_in - 1)
    ix1 = jnp.clip(ix0f.astype(jnp.int32) + 1, 0, w_in - 1)
    iy0 = jnp.clip(iy0f.astype(jnp.int32), 0, h_in - 1)
    iy1 = jnp.clip(iy0f.astype(jnp.int32) + 1, 0, h_in - 1)

    # ---- tiling of the output-pixel (lane) axis -------------------------------
    p_out = h_out * w_out
    t = min(tile, max(128, ((p_out + 127) // 128) * 128))
    t = ((t + 127) // 128) * 128
    p_pad = ((p_out + t - 1) // t) * t
    n_tiles = p_pad // t

    def flat_pad(a, fill):
        a = a.reshape(p_out)
        return jnp.pad(a, (0, p_pad - p_out), constant_values=fill)

    idx = jnp.stack([flat_pad(v, 0) for v in (ix0, ix1, iy0, iy1)], axis=0).astype(jnp.int32)
    wts = jnp.stack([flat_pad(v, 0.0) for v in (wx0, wx1, wy0, wy1)], axis=0).astype(jnp.float32)

    # pad channels to a multiple of 8 so output stores are sublane-full
    c_pad = ((c + 7) // 8) * 8
    src_p = jnp.pad(src[0].astype(jnp.float32), ((0, c_pad - c), (0, 0), (0, 0)))
    src_2d = src_p.reshape(c_pad * h_in, w_in)

    kernel = functools.partial(_st_kernel, h_in=h_in, w_in=w_in, c_pad=c_pad)

    out = pl.pallas_call(
        kernel,
        out_shape=jax.ShapeDtypeStruct((c_pad, p_pad), src.dtype),
        grid=(n_tiles,),
        in_specs=[pl.BlockSpec((4, t), lambda i: (0, i)),                      # indices
                  pl.BlockSpec((4, t), lambda i: (0, i)),                      # weights
                  pl.BlockSpec((c_pad * h_in, w_in), lambda i: (0, 0))],       # src, resident
        out_specs=pl.BlockSpec((c_pad, t), lambda i: (0, i)),
        compiler_params=pltpu.CompilerParams(
            dimension_semantics=("parallel",)),                                # megacore on v7x
    )(idx, wts, src_2d)

    sampled = out[:c, :p_out].reshape(1, c, h_out, w_out)
    if return_phi:
        phi = jnp.stack([new_x, new_y], axis=-1)[None]   # (1, H, W, 2), like torch new_locs
        return sampled, phi
    return sampled


def _reference(src, flowX, flowY, size):
    """Pure-JAX re-implementation of the torch forward (bilinear, align_corners=True)."""
    _, c, h_in, w_in = src.shape
    X, Y = make_base_grid(size)
    new_X = X + flowX
    new_Y = Y + flowY
    new_X = 2.0 * (new_X - new_X.min()) / (new_X.max() - new_X.min()) - 1.0
    new_Y = 2.0 * (new_Y - new_Y.min()) / (new_Y.max() - new_Y.min()) - 1.0
    ix = (new_X + 1.0) * 0.5 * (w_in - 1)
    iy = (new_Y + 1.0) * 0.5 * (h_in - 1)
    ix0f = jnp.floor(ix)
    iy0f = jnp.floor(iy)
    wx1 = ix - ix0f
    wx0 = 1.0 - wx1
    wy1 = iy - iy0f
    wy0 = 1.0 - wy1
    ix0 = jnp.clip(ix0f.astype(jnp.int32), 0, w_in - 1)
    ix1 = jnp.clip(ix0f.astype(jnp.int32) + 1, 0, w_in - 1)
    iy0 = jnp.clip(iy0f.astype(jnp.int32), 0, h_in - 1)
    iy1 = jnp.clip(iy0f.astype(jnp.int32) + 1, 0, h_in - 1)
    s = src[0]  # (C, H_in, W_in)

    def g(iyi, ixi):
        return s[:, iyi, ixi]

    out = (g(iy0, ix0) * (wy0 * wx0) + g(iy0, ix1) * (wy0 * wx1)
           + g(iy1, ix0) * (wy1 * wx0) + g(iy1, ix1) * (wy1 * wx1))
    return out[None]


if __name__ == "__main__":
    key = jax.random.PRNGKey(0)
    k_src, k_fx, k_fy = jax.random.split(key, 3)

    C, S = 4, 16
    size = (S, S)
    src = jax.random.normal(k_src, (1, C, S, S), dtype=jnp.float32)
    flowX = 0.5 * jax.random.normal(k_fx, (S, S), dtype=jnp.float32)
    flowY = 0.5 * jax.random.normal(k_fy, (S, S), dtype=jnp.float32)

    out, phi = spatial_transformer(src, flowX, flowY, size, return_phi=True)
    out = jax.block_until_ready(out)

    ref = _reference(src, flowX, flowY, size)
    np.testing.assert_allclose(np.array(out), np.array(ref), rtol=1e-5, atol=1e-5)
    assert phi.shape == (1, S, S, 2)

    print("KERNEL_OK")
</pallas_src>

<mosaic_0001>
module attributes {stable_mosaic.version = 11 : i64} {
  func.func @_st_kernel(%arg0: i32, %arg1: memref<4x256xi32, #tpu.memory_space<vmem>>, %arg2: memref<4x256xf32, #tpu.memory_space<vmem>>, %arg3: memref<128x16xf32, #tpu.memory_space<vmem>>, %arg4: memref<8x256xf32, #tpu.memory_space<vmem>>) attributes {dimension_semantics = [#tpu.dimension_semantics<parallel>], iteration_bounds = array<i64: 1>, scalar_prefetch = 0 : i64, scratch_operands = 0 : i64, tpu.core_type = #tpu.core_type<tc>, window_params = [{transform_indices = @transform_0, window_bounds = array<i64: 4, 256>}, {transform_indices = @transform_1, window_bounds = array<i64: 4, 256>}, {pipeline_mode = #tpu.pipeline_mode<synchronous>, transform_indices = @transform_2, window_bounds = array<i64: 128, 16>}, {transform_indices = @transform_3, window_bounds = array<i64: 8, 256>}]} {
    %c0 = arith.constant 0 : index
    %c0_0 = arith.constant 0 : index
    %0 = vector.load %arg1[%c0, %c0_0] : memref<4x256xi32, #tpu.memory_space<vmem>>, vector<1x256xi32>
    %c1 = arith.constant 1 : index
    %c0_1 = arith.constant 0 : index
    %1 = vector.load %arg1[%c1, %c0_1] : memref<4x256xi32, #tpu.memory_space<vmem>>, vector<1x256xi32>
    %c2 = arith.constant 2 : index
    %c0_2 = arith.constant 0 : index
    %2 = vector.load %arg1[%c2, %c0_2] : memref<4x256xi32, #tpu.memory_space<vmem>>, vector<1x256xi32>
    %c3 = arith.constant 3 : index
    %c0_3 = arith.constant 0 : index
    %3 = vector.load %arg1[%c3, %c0_3] : memref<4x256xi32, #tpu.memory_space<vmem>>, vector<1x256xi32>
    %c0_4 = arith.constant 0 : index
    %c0_5 = arith.constant 0 : index
    %4 = vector.load %arg2[%c0_4, %c0_5] : memref<4x256xf32, #tpu.memory_space<vmem>>, vector<1x256xf32>
    %c1_6 = arith.constant 1 : index
    %c0_7 = arith.constant 0 : index
    %5 = vector.load %arg2[%c1_6, %c0_7] : memref<4x256xf32, #tpu.memory_space<vmem>>, vector<1x256xf32>
    %c2_8 = arith.constant 2 : index
    %c0_9 = arith.constant 0 : index
    %6 = vector.load %arg2[%c2_8, %c0_9] : memref<4x256xf32, #tpu.memory_space<vmem>>, vector<1x256xf32>
    %c3_10 = arith.constant 3 : index
    %c0_11 = arith.constant 0 : index
    %7 = vector.load %arg2[%c3_10, %c0_11] : memref<4x256xf32, #tpu.memory_space<vmem>>, vector<1x256xf32>
    %8 = tpu.iota {dimensions = array<i32: 0>} : vector<16x256xi32>
    %9 = vector.broadcast %0 : vector<1x256xi32> to vector<16x256xi32>
    %10 = arith.cmpi eq, %8, %9 : vector<16x256xi32>
    %cst = arith.constant 0.000000e+00 : f32
    %11 = vector.shape_cast %4 : vector<1x256xf32> to vector<1x256xf32>
    %12 = vector.broadcast %11 : vector<1x256xf32> to vector<16x256xf32>
    %13 = vector.broadcast %cst : f32 to vector<16x256xf32>
    %14 = arith.select %10, %12, %13 : vector<16x256xi1>, vector<16x256xf32>
    %15 = vector.broadcast %1 : vector<1x256xi32> to vector<16x256xi32>
    %16 = arith.cmpi eq, %8, %15 : vector<16x256xi32>
    %cst_12 = arith.constant 0.000000e+00 : f32
    %17 = vector.shape_cast %5 : vector<1x256xf32> to vector<1x256xf32>
    %18 = vector.broadcast %17 : vector<1x256xf32> to vector<16x256xf32>
    %19 = vector.broadcast %cst_12 : f32 to vector<16x256xf32>
    %20 = arith.select %16, %18, %19 : vector<16x256xi1>, vector<16x256xf32>
    %21 = arith.addf %14, %20 : vector<16x256xf32>
    %22 = tpu.iota {dimensions = array<i32: 0>} : vector<16x256xi32>
    %23 = vector.broadcast %2 : vector<1x256xi32> to vector<16x256xi32>
    %24 = arith.cmpi eq, %22, %23 : vector<16x256xi32>
    %cst_13 = arith.constant 0.000000e+00 : f32
    %25 = vector.shape_cast %6 : vector<1x256xf32> to vector<1x256xf32>
    %26 = vector.broadcast %25 : vector<1x256xf32> to vector<16x256xf32>
    %27 = vector.broadcast %cst_13 : f32 to vector<16x256xf32>
    %28 = arith.select %24, %26, %27 : vector<16x256xi1>, vector<16x256xf32>
    %29 = vector.broadcast %3 : vector<1x256xi32> to vector<16x256xi32>
    %30 = arith.cmpi eq, %22, %29 : vector<16x256xi32>
    %cst_14 = arith.constant 0.000000e+00 : f32
    %31 = vector.shape_cast %7 : vector<1x256xf32> to vector<1x256xf32>
    %32 = vector.broadcast %31 : vector<1x256xf32> to vector<16x256xf32>
    %33 = vector.broadcast %cst_14 : f32 to vector<16x256xf32>
    %34 = arith.select %30, %32, %33 : vector<16x256xi1>, vector<16x256xf32>
    %35 = arith.addf %28, %34 : vector<16x256xf32>
    %c0_15 = arith.constant 0 : index
    %c0_16 = arith.constant 0 : index
    %36 = vector.load %arg3[%c0_15, %c0_16] : memref<128x16xf32, #tpu.memory_space<vmem>>, vector<128x16xf32>
    %cst_17 = arith.constant dense<0.000000e+00> : vector<128x256xf32>
    %37 = tpu.matmul %36, %21, %cst_17 {dimension_numbers = #tpu.dot_dimension_numbers<[1], [0], [0], [1], [0, 0, 1, 1], [], []>} : vector<128x16xf32>, vector<16x256xf32>, vector<128x256xf32> -> vector<128x256xf32>
    %38 = vector.shape_cast %37 : vector<128x256xf32> to vector<8x16x256xf32>
    %39 = vector.shape_cast %35 : vector<16x256xf32> to vector<1x16x256xf32>
    %40 = vector.broadcast %39 : vector<1x16x256xf32> to vector<8x16x256xf32>
    %41 = arith.mulf %38, %40 : vector<8x16x256xf32>
    %cst_18 = arith.constant dense<0.000000e+00> : vector<8x256xf32>
    %42 = vector.multi_reduction <add>, %41, %cst_18 [1] : vector<8x16x256xf32> to vector<8x256xf32>
    %c0_19 = arith.constant 0 : index
    %c0_20 = arith.constant 0 : index
    %43 = vector.load %arg4[%c0_19, %c0_20] : memref<8x256xf32, #tpu.memory_space<vmem>>, vector<8x256xf32>
    tpu.vector_store %arg4[%c0_19, %c0_20], %42 {strides = array<i32>} : memref<8x256xf32, #tpu.memory_space<vmem>>, vector<8x256xf32>,
    return
  }
  func.func @transform_0(%arg0: i32) -> (i32, i32) {
    %c0_i32 = arith.constant 0 : i32
    %c0_i32_0 = arith.constant 0 : i32
    return %c0_i32, %arg0 : i32, i32
  }
  func.func @transform_1(%arg0: i32) -> (i32, i32) {
    %c0_i32 = arith.constant 0 : i32
    %c0_i32_0 = arith.constant 0 : i32
    return %c0_i32, %arg0 : i32, i32
  }
  func.func @transform_2(%arg0: i32) -> (i32, i32) {
    %c0_i32 = arith.constant 0 : i32
    %c0_i32_0 = arith.constant 0 : i32
    %c0_i32_1 = arith.constant 0 : i32
    return %c0_i32, %c0_i32_0 : i32, i32
  }
  func.func @transform_3(%arg0: i32) -> (i32, i32) {
    %c0_i32 = arith.constant 0 : i32
    %c0_i32_0 = arith.constant 0 : i32
    return %c0_i32, %arg0 : i32, i32
  }
}

</mosaic_0001>

<llo_original>
// kernel: tpu_custom_call.1
$region0: #{tpu_custom_call.1}
  #allocation0 [shape = 'u32[]', space=smem, size = 0x4, offset = 0x4, fixed_abs, tag = 'smem constant byte address 0x4 - core index']
  #allocation1 [shape = 'u32[144,128]{1,0:T(1,128)}', space=vmem, size = 0x12000, scoped, tag = 'internal scratch']
  %s0 = inlined_call_operand.vmem [shape: s32[4,256], index: 0, kind: input, shape index: {}]
  %s1 = inlined_call_operand.vmem [shape: f32[4,256], index: 1, kind: input, shape index: {}]
  %s2 = inlined_call_operand.vmem [shape: f32[128,16], index: 2, kind: input, shape index: {}]
  %s3 = inlined_call_operand.hbm [shape: f32[8,256], index: 3, kind: output, shape index: {}]
  %s4 = sld [smem:[#allocation0]]
  $region22: #{tpu_custom_call.1} parent=0
    _
  %s6 = ssub.s32 1, %s4
  %s7 = scalar_select 0, %s6, %s4
  $region1: #{tpu_custom_call.1} parent=0
    #allocation2 [shape = 'u8[8192]{0}', space=vmem, size = 0x2000, scoped, tag = 'output window, operand 0, single buffered']
    #allocation3 [shape = 's32[1]{0}', space=sflag, size = 0x4, scoped, tag = 'scoped memory for tpu_custom_call.1']
    %8 = vsyncpa [#allocation3], 0
    // Predicated region
    $region2: #{tpu_custom_call.1} parent=1 // pred_check
      _
    $region3: #{tpu_custom_call.1} parent=1 // pred_check_branch
      %10 = sbr.rel (0) target = $region5
    $region4: #{tpu_custom_call.1} parent=1 // pred_region
      _
    $region5: #{tpu_custom_call.1} parent=1 // pred_fallthru
      _
    // Predicated region
    $region6: #{tpu_custom_call.1} parent=1 // pred_check
      _
    $region7: #{tpu_custom_call.1} parent=1 // pred_check_branch
      %12 = sbr.rel (0) target = $region9
    $region8: #{tpu_custom_call.1} parent=1 // pred_region
      _
    $region9: #{tpu_custom_call.1} parent=1 // pred_fallthru
      _
    // Predicated region
    $region10: #{tpu_custom_call.1} parent=1 // pred_check
      _
    $region11: #{tpu_custom_call.1} parent=1 // pred_check_branch
      %14 = sbr.rel (0) target = $region13
    $region12: #{tpu_custom_call.1} parent=1 // pred_region
      _
    $region13: #{tpu_custom_call.1} parent=1 // pred_fallthru
      _
    %v15 = vld [vmem:[%s0] ss:$4 sm:$0x3]
    %s16 = scalar_lea.vmem %s0, 1
    %v17 = vld [vmem:[%s16] ss:$4 sm:$0x3]
    %s18 = scalar_lea.vmem %s0, 2
    %v19 = vld [vmem:[%s18] ss:$4 sm:$0x3]
    %s20 = scalar_lea.vmem %s0, 3
    %v21 = vld [vmem:[%s20] ss:$4 sm:$0x3]
    %v22 = vld [vmem:[%s1] ss:$4 sm:$0x3]
    %s23 = scalar_lea.vmem %s1, 1
    %v24 = vld [vmem:[%s23] ss:$4 sm:$0x3]
    %s25 = scalar_lea.vmem %s1, 2
    %v26 = vld [vmem:[%s25] ss:$4 sm:$0x3]
    %s27 = scalar_lea.vmem %s1, 3
    %v28 = vld [vmem:[%s27] ss:$4 sm:$0x3]
    %v29 = vlaneseq
    %v30 = vshrl.u32 %v29, 7
    %v31 = vadd.s32 %v30, 8
    %v32 = vlaneseq
    %v33 = vshrl.u32 %v32, 7
    %v34 = vsub.s32 0, %v33
    %v35 = vrot.slane %v15, %v34
    %v36 = vlaneseq
    %v37 = vshrl.u32 %v36, 7
    %v38 = vsub.s32 1, %v37
    %v39 = vrot.slane %v15, %v38
    %vm40 = vcmp.eq.s32.totalorder %v30, %v35
    %vm41 = vcmp.eq.s32.totalorder %v30, %v39
    %vm42 = vcmp.eq.s32.totalorder %v31, %v35
    %vm43 = vcmp.eq.s32.totalorder %v31, %v39
    %v45 = vlaneseq
    %v46 = vshrl.u32 %v45, 7
    %v47 = vsub.s32 0, %v46
    %v48 = vrot.slane %v22, %v47
    %v49 = vlaneseq
    %v50 = vshrl.u32 %v49, 7
    %v51 = vsub.s32 1, %v50
    %v52 = vrot.slane %v22, %v51
    %v55 = vsel %vm40, %v48, 0.0
    %v56 = vsel %vm41, %v52, 0.0
    %v57 = vsel %vm42, %v48, 0.0
    %v58 = vsel %vm43, %v52, 0.0
    %v59 = vlaneseq
    %v60 = vshrl.u32 %v59, 7
    %v61 = vsub.s32 0, %v60
    %v62 = vrot.slane %v17, %v61
    %v63 = vlaneseq
    %v64 = vshrl.u32 %v63, 7
    %v65 = vsub.s32 1, %v64
    %v66 = vrot.slane %v17, %v65
    %vm67 = vcmp.eq.s32.totalorder %v30, %v62
    %vm68 = vcmp.eq.s32.totalorder %v30, %v66
    %vm69 = vcmp.eq.s32.totalorder %v31, %v62
    %vm70 = vcmp.eq.s32.totalorder %v31, %v66
    %v72 = vlaneseq
    %v73 = vshrl.u32 %v72, 7
    %v74 = vsub.s32 0, %v73
    %v75 = vrot.slane %v24, %v74
    %v76 = vlaneseq
    %v77 = vshrl.u32 %v76, 7
    %v78 = vsub.s32 1, %v77
    %v79 = vrot.slane %v24, %v78
    %v82 = vsel %vm67, %v75, 0.0
    %v83 = vsel %vm68, %v79, 0.0
    %v84 = vsel %vm69, %v75, 0.0
    %v85 = vsel %vm70, %v79, 0.0
    %v86 = vadd.f32 %v55, %v82
    %v87 = vadd.f32 %v56, %v83
    %v88 = vadd.f32 %v57, %v84
    %v89 = vadd.f32 %v58, %v85
    %v90 = vlaneseq
    %v91 = vshrl.u32 %v90, 7
    %v92 = vsub.s32 0, %v91
    %v93 = vrot.slane %v19, %v92
    %v94 = vlaneseq
    %v95 = vshrl.u32 %v94, 7
    %v96 = vsub.s32 1, %v95
    %v97 = vrot.slane %v19, %v96
    %vm98 = vcmp.eq.s32.totalorder %v30, %v93
    %vm99 = vcmp.eq.s32.totalorder %v30, %v97
    %vm100 = vcmp.eq.s32.totalorder %v31, %v93
    %vm101 = vcmp.eq.s32.totalorder %v31, %v97
    %v103 = vlaneseq
    %v104 = vshrl.u32 %v103, 7
    %v105 = vsub.s32 0, %v104
    %v106 = vrot.slane %v26, %v105
    %v107 = vlaneseq
    %v108 = vshrl.u32 %v107, 7
    %v109 = vsub.s32 1, %v108
    %v110 = vrot.slane %v26, %v109
    %v113 = vsel %vm98, %v106, 0.0
    %v114 = vsel %vm99, %v110, 0.0
    %v115 = vsel %vm100, %v106, 0.0
    %v116 = vsel %vm101, %v110, 0.0
    %v117 = vlaneseq
    %v118 = vshrl.u32 %v117, 7
    %v119 = vsub.s32 0, %v118
    %v120 = vrot.slane %v21, %v119
    %v121 = vlaneseq
    %v122 = vshrl.u32 %v121, 7
    %v123 = vsub.s32 1, %v122
    %v124 = vrot.slane %v21, %v123
    %vm125 = vcmp.eq.s32.totalorder %v30, %v120
    %vm126 = vcmp.eq.s32.totalorder %v30, %v124
    %vm127 = vcmp.eq.s32.totalorder %v31, %v120
    %vm128 = vcmp.eq.s32.totalorder %v31, %v124
    %v130 = vlaneseq
    %v131 = vshrl.u32 %v130, 7
    %v132 = vsub.s32 0, %v131
    %v133 = vrot.slane %v28, %v132
    %v134 = vlaneseq
    %v135 = vshrl.u32 %v134, 7
    %v136 = vsub.s32 1, %v135
    %v137 = vrot.slane %v28, %v136
    %v140 = vsel %vm125, %v133, 0.0
    %v141 = vsel %vm126, %v137, 0.0
    %v142 = vsel %vm127, %v133, 0.0
    %v143 = vsel %vm128, %v137, 0.0
    %v144 = vadd.f32 %v113, %v140
    %v145 = vadd.f32 %v114, %v141
    %v146 = vadd.f32 %v115, %v142
    %v147 = vadd.f32 %v116, %v143
    %v148 = vld [vmem:[%s2] sm:$0xff]
    %v149 = vld [vmem:[%s2 + $0x8] sm:$0xff]
    %v150 = vld [vmem:[%s2 + $0x10] sm:$0xff]
    %v151 = vld [vmem:[%s2 + $0x18] sm:$0xff]
    %v152 = vld [vmem:[%s2 + $0x20] sm:$0xff]
    %v153 = vld [vmem:[%s2 + $0x28] sm:$0xff]
    %v154 = vld [vmem:[%s2 + $0x30] sm:$0xff]
    %v155 = vld [vmem:[%s2 + $0x38] sm:$0xff]
    %v156 = vld [vmem:[%s2 + $0x40] sm:$0xff]
    %v157 = vld [vmem:[%s2 + $0x48] sm:$0xff]
    %v158 = vld [vmem:[%s2 + $0x50] sm:$0xff]
    %v159 = vld [vmem:[%s2 + $0x58] sm:$0xff]
    %v160 = vld [vmem:[%s2 + $0x60] sm:$0xff]
    %v161 = vld [vmem:[%s2 + $0x68] sm:$0xff]
    %v162 = vld [vmem:[%s2 + $0x70] sm:$0xff]
    %v163 = vld [vmem:[%s2 + $0x78] sm:$0xff]
    %vm164 = vcmask 130048
    %v166 = vsel %vm164, %v148, 0
    %v169 = vsel %vm164, %v149, 0
    %v172 = vsel %vm164, %v150, 0
    %v175 = vsel %vm164, %v151, 0
    %v178 = vsel %vm164, %v152, 0
    %v181 = vsel %vm164, %v153, 0
    %v184 = vsel %vm164, %v154, 0
    %v187 = vsel %vm164, %v155, 0
    %v190 = vsel %vm164, %v156, 0
    %v193 = vsel %vm164, %v157, 0
    %v196 = vsel %vm164, %v158, 0
    %v199 = vsel %vm164, %v159, 0
    %v202 = vsel %vm164, %v160, 0
    %v205 = vsel %vm164, %v161, 0
    %v208 = vsel %vm164, %v162, 0
    %v211 = vsel %vm164, %v163, 0
    %213 = vmatprep.subr.mxu0 %v87
    %214 = vmatpush1.msra.mxu0 %v86
    %215 = vmatprep.subr.mxu0 %v89
    %216 = vmatpush1.msra.mxu0 %v88
    %217 = vmatprep.subr.mxu0 0.0
    %218 = vmatpush1.msra.mxu0 0.0
    %219 = vmatprep.subr.mxu0 0.0
    %220 = vmatpush1.msra.mxu0 0.0
    %221 = vmatprep.subr.mxu0 0.0
    %222 = vmatpush1.msra.mxu0 0.0
    %223 = vmatprep.subr.mxu0 0.0
    %224 = vmatpush1.msra.mxu0 0.0
    %225 = vmatprep.subr.mxu0 0.0
    %226 = vmatpush1.msra.mxu0 0.0
    %227 = vmatprep.subr.mxu0 0.0
    %228 = vmatpush1.msra.mxu0 0.0
    %229 = vmatprep.subr.mxu0 0.0
    %230 = vmatpush1.msra.mxu0 0.0
    %231 = vmatprep.subr.mxu0 0.0
    %232 = vmatpush1.msra.mxu0 0.0
    %233 = vmatprep.subr.mxu0 0.0
    %234 = vmatpush1.msra.mxu0 0.0
    %235 = vmatprep.subr.mxu0 0.0
    %236 = vmatpush1.msra.mxu0 0.0
    %237 = vmatprep.subr.mxu0 0.0
    %238 = vmatpush1.msra.mxu0 0.0
    %239 = vmatprep.subr.mxu0 0.0
    %240 = vmatpush1.msra.mxu0 0.0
    %241 = vmatprep.subr.mxu0 0.0
    %242 = vmatpush1.msra.mxu0 0.0
    %243 = vmatprep.subr.mxu0 0.0
    %244 = vmatpush1.msra.mxu0 0.0
    %245 = vmatprep.subr.mxu0 0.0
    %246 = vmatpush1.msra.mxu0 0.0
    %247 = vmatprep.subr.mxu0 0.0
    %248 = vmatpush1.msra.mxu0 0.0
    %249 = vmatprep.subr.mxu0 0.0
    %250 = vmatpush1.msra.mxu0 0.0
    %251 = vmatprep.subr.mxu0 0.0
    %252 = vmatpush1.msra.mxu0 0.0
    %253 = vmatprep.subr.mxu0 0.0
    %254 = vmatpush1.msra.mxu0 0.0
    %255 = vmatprep.subr.mxu0 0.0
    %256 = vmatpush1.msra.mxu0 0.0
    %257 = vmatprep.subr.mxu0 0.0
    %258 = vmatpush1.msra.mxu0 0.0
    %259 = vmatprep.subr.mxu0 0.0
    %260 = vmatpush1.msra.mxu0 0.0
    %261 = vmatprep.subr.mxu0 0.0
    %262 = vmatpush1.msra.mxu0 0.0
    %263 = vmatprep.subr.mxu0 0.0
    %264 = vmatpush1.msra.mxu0 0.0
    %265 = vmatprep.subr.mxu0 0.0
    %266 = vmatpush1.msra.mxu0 0.0
    %267 = vmatprep.subr.mxu0 0.0
    %268 = vmatpush1.msra.mxu0 0.0
    %269 = vmatprep.subr.mxu0 0.0
    %270 = vmatpush1.msra.mxu0 0.0
    %271 = vmatprep.subr.mxu0 0.0
    %272 = vmatpush1.msra.mxu0 0.0
    %273 = vmatprep.subr.mxu0 0.0
    %274 = vmatpush1.msra.mxu0 0.0
    %275 = vmatprep.subr.mxu0 0.0
    %276 = vmatpush1.msra.mxu0 0.0
    %277 = vmatprep.mubr.f32.mxu0 0.0
    %278 = vmatmul.mubr.f32.gmra.mrb[0].mxu0 %v166
    %v279 = vpop.f32.mrb[0].mxu0
    %v280 = vadd.f32 0.0, %v279
    %v281 = vpop.f32.mrb[0].mxu0
    %v282 = vadd.f32 0.0, %v281
    %283 = vmatprep.mubr.f32.mxu0 0.0
    %284 = vmatmul.mubr.f32.gmra.mrb[0].mxu0 %v169
    %v285 = vpop.f32.mrb[0].mxu0
    %v286 = vadd.f32 0.0, %v285
    %v287 = vpop.f32.mrb[0].mxu0
    %v288 = vadd.f32 0.0, %v287
    %289 = vmatprep.mubr.f32.mxu0 0.0
    %290 = vmatmul.mubr.f32.gmra.mrb[0].mxu0 %v172
    %v291 = vpop.f32.mrb[0].mxu0
    %v292 = vadd.f32 0.0, %v291
    %v293 = vpop.f32.mrb[0].mxu0
    %v294 = vadd.f32 0.0, %v293
    %295 = vmatprep.mubr.f32.mxu0 0.0
    %296 = vmatmul.mubr.f32.gmra.mrb[0].mxu0 %v175
    %v297 = vpop.f32.mrb[0].mxu0
    %v298 = vadd.f32 0.0, %v297
    %v299 = vpop.f32.mrb[0].mxu0
    %v300 = vadd.f32 0.0, %v299
    %301 = vmatprep.mubr.f32.mxu0 0.0
    %302 = vmatmul.mubr.f32.gmra.mrb[0].mxu0 %v178
    %v303 = vpop.f32.mrb[0].mxu0
    %v304 = vadd.f32 0.0, %v303
    %v305 = vpop.f32.mrb[0].mxu0
    %v306 = vadd.f32 0.0, %v305
    %307 = vmatprep.mubr.f32.mxu0 0.0
    %308 = vmatmul.mubr.f32.gmra.mrb[0].mxu0 %v181
    %v309 = vpop.f32.mrb[0].mxu0
    %v310 = vadd.f32 0.0, %v309
    %v311 = vpop.f32.mrb[0].mxu0
    %v312 = vadd.f32 0.0, %v311
    %313 = vmatprep.mubr.f32.mxu0 0.0
    %314 = vmatmul.mubr.f32.gmra.mrb[0].mxu0 %v184
    %v315 = vpop.f32.mrb[0].mxu0
    %v316 = vadd.f32 0.0, %v315
    %v317 = vpop.f32.mrb[0].mxu0
    %v318 = vadd.f32 0.0, %v317
    %319 = vmatprep.mubr.f32.mxu0 0.0
    %320 = vmatmul.mubr.f32.gmra.mrb[0].mxu0 %v187
    %v321 = vpop.f32.mrb[0].mxu0
    %v322 = vadd.f32 0.0, %v321
    %v323 = vpop.f32.mrb[0].mxu0
    %v324 = vadd.f32 0.0, %v323
    %325 = vmatprep.mubr.f32.mxu0 0.0
    %326 = vmatmul.mubr.f32.gmra.mrb[0].mxu0 %v190
    %v327 = vpop.f32.mrb[0].mxu0
    %v328 = vadd.f32 0.0, %v327
    %v329 = vpop.f32.mrb[0].mxu0
    %v330 = vadd.f32 0.0, %v329
    %331 = vmatprep.mubr.f32.mxu0 0.0
    %332 = vmatmul.mubr.f32.gmra.mrb[0].mxu0 %v193
    %v333 = vpop.f32.mrb[0].mxu0
    %v334 = vadd.f32 0.0, %v333
    %v335 = vpop.f32.mrb[0].mxu0
    %v336 = vadd.f32 0.0, %v335
    %337 = vmatprep.mubr.f32.mxu0 0.0
    %338 = vmatmul.mubr.f32.gmra.mrb[0].mxu0 %v196
    %v339 = vpop.f32.mrb[0].mxu0
    %v340 = vadd.f32 0.0, %v339
    %v341 = vpop.f32.mrb[0].mxu0
    %v342 = vadd.f32 0.0, %v341
    %343 = vmatprep.mubr.f32.mxu0 0.0
    %344 = vmatmul.mubr.f32.gmra.mrb[0].mxu0 %v199
    %v345 = vpop.f32.mrb[0].mxu0
    %v346 = vadd.f32 0.0, %v345
    %v347 = vpop.f32.mrb[0].mxu0
    %v348 = vadd.f32 0.0, %v347
    %349 = vmatprep.mubr.f32.mxu0 0.0
    %350 = vmatmul.mubr.f32.gmra.mrb[0].mxu0 %v202
    %v351 = vpop.f32.mrb[0].mxu0
    %v352 = vadd.f32 0.0, %v351
    %v353 = vpop.f32.mrb[0].mxu0
    %v354 = vadd.f32 0.0, %v353
    %355 = vmatprep.mubr.f32.mxu0 0.0
    %356 = vmatmul.mubr.f32.gmra.mrb[0].mxu0 %v205
    %v357 = vpop.f32.mrb[0].mxu0
    %v358 = vadd.f32 0.0, %v357
    %v359 = vpop.f32.mrb[0].mxu0
    %v360 = vadd.f32 0.0, %v359
    %361 = vmatprep.mubr.f32.mxu0 0.0
    %362 = vmatmul.mubr.f32.gmra.mrb[0].mxu0 %v208
    %v363 = vpop.f32.mrb[0].mxu0
    %v364 = vadd.f32 0.0, %v363
    %v365 = vpop.f32.mrb[0].mxu0
    %v366 = vadd.f32 0.0, %v365
    %367 = vmatprep.mubr.f32.mxu0 0.0
    %368 = vmatmul.mubr.f32.gmra.mrb[0].mxu0 %v211
    %v369 = vpop.f32.mrb[0].mxu0
    %v370 = vadd.f32 0.0, %v369
    %v371 = vpop.f32.mrb[0].mxu0
    %v372 = vadd.f32 0.0, %v371
    %373 = vdwg.mxu0
    %v374 = vmul.f32 %v280, %v144
    %v375 = vmul.f32 %v282, %v145
    %v376 = vmul.f32 %v286, %v146
    %v377 = vmul.f32 %v288, %v147
    %v378 = vmul.f32 %v292, %v144
    %v379 = vmul.f32 %v294, %v145
    %v380 = vmul.f32 %v298, %v146
    %v381 = vmul.f32 %v300, %v147
    %v382 = vmul.f32 %v304, %v144
    %v383 = vmul.f32 %v306, %v145
    %v384 = vmul.f32 %v310, %v146
    %v385 = vmul.f32 %v312, %v147
    %v386 = vmul.f32 %v316, %v144
    %v387 = vmul.f32 %v318, %v145
    %v388 = vmul.f32 %v322, %v146
    %v389 = vmul.f32 %v324, %v147
    %v390 = vmul.f32 %v328, %v144
    %v391 = vmul.f32 %v330, %v145
    %v392 = vmul.f32 %v334, %v146
    %v393 = vmul.f32 %v336, %v147
    %v394 = vmul.f32 %v340, %v144
    %v395 = vmul.f32 %v342, %v145
    %v396 = vmul.f32 %v346, %v146
    %v397 = vmul.f32 %v348, %v147
    %v398 = vmul.f32 %v352, %v144
    %v399 = vmul.f32 %v354, %v145
    %v400 = vmul.f32 %v358, %v146
    %v401 = vmul.f32 %v360, %v147
    %v402 = vmul.f32 %v364, %v144
    %v403 = vmul.f32 %v366, %v145
    %v404 = vmul.f32 %v370, %v146
    %v405 = vmul.f32 %v372, %v147
    %v406 = vadd.f32 %v374, %v376
    %v407 = vrot.slane %v406, 4
    %v408 = vadd.f32 %v406, %v407
    %v409 = vrot.slane %v408, 2
    %v410 = vadd.f32 %v408, %v409
    %v411 = vrot.slane %v410, 1
    %v412 = vadd.f32 %v410, %v411
    %v413 = vadd.f32 %v375, %v377
    %v414 = vrot.slane %v413, 4
    %v415 = vadd.f32 %v413, %v414
    %v416 = vrot.slane %v415, 2
    %v417 = vadd.f32 %v415, %v416
    %v418 = vrot.slane %v417, 1
    %v419 = vadd.f32 %v417, %v418
    %v420 = vadd.f32 %v378, %v380
    %v421 = vrot.slane %v420, 4
    %v422 = vadd.f32 %v420, %v421
    %v423 = vrot.slane %v422, 2
    %v424 = vadd.f32 %v422, %v423
    %v425 = vrot.slane %v424, 1
    %v426 = vadd.f32 %v424, %v425
    %v427 = vadd.f32 %v379, %v381
    %v428 = vrot.slane %v427, 4
    %v429 = vadd.f32 %v427, %v428
    %v430 = vrot.slane %v429, 2
    %v431 = vadd.f32 %v429, %v430
    %v432 = vrot.slane %v431, 1
    %v433 = vadd.f32 %v431, %v432
    %v434 = vadd.f32 %v382, %v384
    %v435 = vrot.slane %v434, 4
    %v436 = vadd.f32 %v434, %v435
    %v437 = vrot.slane %v436, 2
    %v438 = vadd.f32 %v436, %v437
    %v439 = vrot.slane %v438, 1
    %v440 = vadd.f32 %v438, %v439
    %v441 = vadd.f32 %v383, %v385
    %v442 = vrot.slane %v441, 4
    %v443 = vadd.f32 %v441, %v442
    %v444 = vrot.slane %v443, 2
    %v445 = vadd.f32 %v443, %v444
    %v446 = vrot.slane %v445, 1
    %v447 = vadd.f32 %v445, %v446
    %v448 = vadd.f32 %v386, %v388
    %v449 = vrot.slane %v448, 4
    %v450 = vadd.f32 %v448, %v449
    %v451 = vrot.slane %v450, 2
    %v452 = vadd.f32 %v450, %v451
    %v453 = vrot.slane %v452, 1
    %v454 = vadd.f32 %v452, %v453
    %v455 = vadd.f32 %v387, %v389
    %v456 = vrot.slane %v455, 4
    %v457 = vadd.f32 %v455, %v456
    %v458 = vrot.slane %v457, 2
    %v459 = vadd.f32 %v457, %v458
    %v460 = vrot.slane %v459, 1
    %v461 = vadd.f32 %v459, %v460
    %v462 = vadd.f32 %v390, %v392
    %v463 = vrot.slane %v462, 4
    %v464 = vadd.f32 %v462, %v463
    %v465 = vrot.slane %v464, 2
    %v466 = vadd.f32 %v464, %v465
    %v467 = vrot.slane %v466, 1
    %v468 = vadd.f32 %v466, %v467
    %v469 = vadd.f32 %v391, %v393
    %v470 = vrot.slane %v469, 4
    %v471 = vadd.f32 %v469, %v470
    %v472 = vrot.slane %v471, 2
    %v473 = vadd.f32 %v471, %v472
    %v474 = vrot.slane %v473, 1
    %v475 = vadd.f32 %v473, %v474
    %v476 = vadd.f32 %v394, %v396
    %v477 = vrot.slane %v476, 4
    %v478 = vadd.f32 %v476, %v477
    %v479 = vrot.slane %v478, 2
    %v480 = vadd.f32 %v478, %v479
    %v481 = vrot.slane %v480, 1
    %v482 = vadd.f32 %v480, %v481
    %v483 = vadd.f32 %v395, %v397
    %v484 = vrot.slane %v483, 4
    %v485 = vadd.f32 %v483, %v484
    %v486 = vrot.slane %v485, 2
    %v487 = vadd.f32 %v485, %v486
    %v488 = vrot.slane %v487, 1
    %v489 = vadd.f32 %v487, %v488
    %v490 = vadd.f32 %v398, %v400
    %v491 = vrot.slane %v490, 4
    %v492 = vadd.f32 %v490, %v491
    %v493 = vrot.slane %v492, 2
    %v494 = vadd.f32 %v492, %v493
    %v495 = vrot.slane %v494, 1
    %v496 = vadd.f32 %v494, %v495
    %v497 = vadd.f32 %v399, %v401
    %v498 = vrot.slane %v497, 4
    %v499 = vadd.f32 %v497, %v498
    %v500 = vrot.slane %v499, 2
    %v501 = vadd.f32 %v499, %v500
    %v502 = vrot.slane %v501, 1
    %v503 = vadd.f32 %v501, %v502
    %v504 = vadd.f32 %v402, %v404
    %v505 = vrot.slane %v504, 4
    %v506 = vadd.f32 %v504, %v505
    %v507 = vrot.slane %v506, 2
    %v508 = vadd.f32 %v506, %v507
    %v509 = vrot.slane %v508, 1
    %v510 = vadd.f32 %v508, %v509
    %v511 = vadd.f32 %v403, %v405
    %v512 = vrot.slane %v511, 4
    %v513 = vadd.f32 %v511, %v512
    %v514 = vrot.slane %v513, 2
    %v515 = vadd.f32 %v513, %v514
    %v516 = vrot.slane %v515, 1
    %v517 = vadd.f32 %v515, %v516
    %vm534 = vcmask 1041409
    %v535 = vsel %vm534, %v426, %v412
    %vm536 = vcmask 1042434
    %v537 = vsel %vm536, %v440, %v535
    %vm538 = vcmask 1043459
    %v539 = vsel %vm538, %v454, %v537
    %vm540 = vcmask 1044484
    %v541 = vsel %vm540, %v468, %v539
    %vm542 = vcmask 1045509
    %v543 = vsel %vm542, %v482, %v541
    %vm544 = vcmask 1046534
    %v545 = vsel %vm544, %v496, %v543
    %vm546 = vcmask 1047559
    %v547 = vsel %vm546, %v510, %v545
    %v548 = vsel %vm534, %v433, %v419
    %v549 = vsel %vm536, %v447, %v548
    %v550 = vsel %vm538, %v461, %v549
    %v551 = vsel %vm540, %v475, %v550
    %v552 = vsel %vm542, %v489, %v551
    %v553 = vsel %vm544, %v503, %v552
    %v554 = vsel %vm546, %v517, %v553
    %557 = vst [vmem:[#allocation2] sm:$0xff] %v547
    %558 = vst [vmem:[#allocation2 + $0x8] sm:$0xff] %v554
    // Predicated region
    $region14: #{tpu_custom_call.1} parent=1 // pred_check
      _
    $region15: #{tpu_custom_call.1} parent=1 // pred_check_branch
      %560 = sbr.rel (0) target = $region17
    $region16: #{tpu_custom_call.1} parent=1 // pred_region
      %s562 = ssub.s32 256, 256
      %563 = vsyncadd [#allocation3], %s562
      %s565 = sshll.u32 [#allocation2], 4
      %s566 = int_to_ptr.vmem [resolvable:$true] %s565
      %568 = dma.vmem_to_hbm [thread:$0]  %s566, 256, %s3, [#allocation3]
    $region17: #{tpu_custom_call.1} parent=1 // pred_fallthru
      _
    // Predicated region
    $region18: #{tpu_custom_call.1} parent=1 // pred_check
      _
    $region19: #{tpu_custom_call.1} parent=1 // pred_check_branch
      %570 = sbr.rel (0) target = $region21
    $region20: #{tpu_custom_call.1} parent=1 // pred_region
      %571 = dma.done [#allocation3], 256
    $region21: #{tpu_custom_call.1} parent=1 // pred_fallthru
      _
    %572 = vsyncpa [#allocation3], 1

</llo_original>
